<compile_context>
chip_gen: v5e
topology: v5e:2x2
jax: 0.10.0
libtpu: 0.0.40
codegen_flags: <defaults>
</compile_context>

<pallas_src>
import jax
import jax.numpy as jnp
from jax.experimental import pallas as pl
from jax.experimental.pallas import tpu as pltpu

# ---- model hyper-parameters (mirrors the PyTorch script) -------------------
N_LAYERS = 2          # quantum layers (unused: entangler untranslatable)
N_QUBITS = 8
HIDDEN_SIZE = 8
INPUT_SIZE = 8        # train_features.shape[-1] -> pick 8
OUTPUT_SIZE = 1

BATCH = 2
SEQ = 8


def lstm_quantum_fc_kernel(x_ref, wih_ref, whh_ref, b_ref, wfc_ref, bfc_ref,
                           o_ref):
    """Entire forward pass in one invocation (single grid step).

    x_ref is time-major flattened: row (t*B + b) holds x[b, t, :].
    """
    SB, I = x_ref.shape
    H = whh_ref.shape[0]
    B = o_ref.shape[0]
    S = SB // B

    # --- load loop-invariant weights once; keep them live as values ---------
    wih = wih_ref[...]                       # (I, 4H)
    whh = whh_ref[...]                       # (H, 4H)
    b = b_ref[...]                           # (1, 4H)

    # --- hoisted input projection: one MXU matmul for ALL time steps --------
    xp = jnp.dot(x_ref[...], wih,
                 preferred_element_type=jnp.float32) + b        # (S*B, 4H)

    # --- serial LSTM recurrence, statically unrolled (S is compile-time) ----
    h = jnp.zeros((B, H), jnp.float32)
    c = jnp.zeros((B, H), jnp.float32)
    for t in range(S):
        gates = xp[t * B:(t + 1) * B, :] + jnp.dot(
            h, whh, preferred_element_type=jnp.float32)          # (B, 4H)
        sig = jax.nn.sigmoid(gates)          # one EUP pass over full tile
        th = jnp.tanh(gates)                 # one EUP pass over full tile
        i_g = sig[:, 0 * H:1 * H]
        f_g = sig[:, 1 * H:2 * H]
        g_g = th[:, 2 * H:3 * H]
        o_g = sig[:, 3 * H:4 * H]
        c = f_g * c + i_g * g_g
        h = o_g * jnp.tanh(c)

    # --- "quantum" stage: AngleEmbedding + PauliZ expectations == cos(h) ----
    hq = jnp.tanh(jnp.cos(h))                                   # (B, H)

    # --- fc (output_size == 1): lane-wise reduction, written once -----------
    o_ref[...] = (jnp.sum(hq * wfc_ref[...], axis=-1, keepdims=True)
                  + bfc_ref[...])


def advanced_lstm_network(x, wih_t, whh_t, b, wfc_row, bfc):
    """x: (B, S, I) float32 (batch-first, like the PyTorch module)."""
    B, S, I = x.shape
    H = whh_t.shape[0]

    # one-time layout plumbing outside the kernel: time-major, flattened rows
    x_tm = jnp.transpose(x, (1, 0, 2)).reshape(S * B, I)        # (S*B, I)

    grid_spec = pltpu.PrefetchScalarGridSpec(
        num_scalar_prefetch=0,
        grid=(1,),                                          # single invocation
        in_specs=[
            pl.BlockSpec((S * B, I), lambda i: (0, 0)),          # x (full)
            pl.BlockSpec((I, 4 * H), lambda i: (0, 0)),          # W_ih^T
            pl.BlockSpec((H, 4 * H), lambda i: (0, 0)),          # W_hh^T
            pl.BlockSpec((1, 4 * H), lambda i: (0, 0)),          # bias (ih+hh)
            pl.BlockSpec((1, H), lambda i: (0, 0)),              # W_fc row
            pl.BlockSpec((1, OUTPUT_SIZE), lambda i: (0, 0)),    # b_fc
        ],
        out_specs=pl.BlockSpec((B, OUTPUT_SIZE), lambda i: (0, 0)),
    )

    return pl.pallas_call(
        lstm_quantum_fc_kernel,
        out_shape=jax.ShapeDtypeStruct((B, OUTPUT_SIZE), jnp.float32),
        grid_spec=grid_spec,
        compiler_params=pltpu.CompilerParams(
            dimension_semantics=("arbitrary",)),
    )(x_tm, wih_t, whh_t, b, wfc_row, bfc)


def reference_forward(x, wih_t, whh_t, b, wfc_row, bfc):
    """Plain-JAX reference with identical semantics (for verification)."""
    B, S, I = x.shape
    H = whh_t.shape[0]
    h = jnp.zeros((B, H), jnp.float32)
    c = jnp.zeros((B, H), jnp.float32)
    for t in range(S):
        gates = x[:, t, :] @ wih_t + h @ whh_t + b
        i_g = jax.nn.sigmoid(gates[:, :H])
        f_g = jax.nn.sigmoid(gates[:, H:2 * H])
        g_g = jnp.tanh(gates[:, 2 * H:3 * H])
        o_g = jax.nn.sigmoid(gates[:, 3 * H:])
        c = f_g * c + i_g * g_g
        h = o_g * jnp.tanh(c)
    return jnp.tanh(jnp.cos(h)) @ wfc_row.T + bfc


if __name__ == "__main__":
    key = jax.random.PRNGKey(0)
    kx, k1, k2, k3, k4, k5, k6 = jax.random.split(key, 7)

    # deterministic synthetic parameters (PyTorch-style small uniform init)
    scale = 1.0 / jnp.sqrt(HIDDEN_SIZE)
    w_ih = jax.random.uniform(k1, (4 * HIDDEN_SIZE, INPUT_SIZE),
                              minval=-scale, maxval=scale, dtype=jnp.float32)
    w_hh = jax.random.uniform(k2, (4 * HIDDEN_SIZE, HIDDEN_SIZE),
                              minval=-scale, maxval=scale, dtype=jnp.float32)
    b_ih = jax.random.uniform(k3, (4 * HIDDEN_SIZE,),
                              minval=-scale, maxval=scale, dtype=jnp.float32)
    b_hh = jax.random.uniform(k4, (4 * HIDDEN_SIZE,),
                              minval=-scale, maxval=scale, dtype=jnp.float32)
    w_fc = jax.random.uniform(k5, (OUTPUT_SIZE, HIDDEN_SIZE),
                              minval=-scale, maxval=scale, dtype=jnp.float32)
    b_fc = jax.random.uniform(k6, (OUTPUT_SIZE,),
                              minval=-scale, maxval=scale, dtype=jnp.float32)

    # kernel-friendly transposed / folded views (prepared once, off hot path)
    wih_t = jnp.transpose(w_ih)                            # (I, 4H)
    whh_t = jnp.transpose(w_hh)                            # (H, 4H)
    b_sum = (b_ih + b_hh).reshape(1, 4 * HIDDEN_SIZE)      # (1, 4H)
    wfc_row = w_fc                                         # (1, H)
    bfc = b_fc.reshape(1, OUTPUT_SIZE)                     # (1, 1)

    # input: (batch, seq, input_size)  -- batch-first, like the nn.Module
    x = jax.random.normal(kx, (BATCH, SEQ, INPUT_SIZE), dtype=jnp.float32)

    out = advanced_lstm_network(x, wih_t, whh_t, b_sum, wfc_row, bfc)
    out = jax.block_until_ready(out)

    ref = reference_forward(x, wih_t, whh_t, b_sum, wfc_row, bfc)
    if not jnp.allclose(out, ref, atol=1e-5, rtol=1e-5):
        raise AssertionError(f"mismatch: kernel={out} ref={ref}")

    print("KERNEL_OK")
</pallas_src>

<mosaic_0001>
module attributes {stable_mosaic.version = 11 : i64} {
  func.func @lstm_quantum_fc_kernel(%arg0: i32, %arg1: memref<16x8xf32, #tpu.memory_space<vmem>>, %arg2: memref<8x32xf32, #tpu.memory_space<vmem>>, %arg3: memref<8x32xf32, #tpu.memory_space<vmem>>, %arg4: memref<1x32xf32, #tpu.memory_space<vmem>>, %arg5: memref<1x8xf32, #tpu.memory_space<vmem>>, %arg6: memref<1x1xf32, #tpu.memory_space<vmem>>, %arg7: memref<2x1xf32, #tpu.memory_space<vmem>>) attributes {dimension_semantics = [#tpu.dimension_semantics<arbitrary>], iteration_bounds = array<i64: 1>, scalar_prefetch = 0 : i64, scratch_operands = 0 : i64, tpu.core_type = #tpu.core_type<tc>, window_params = [{pipeline_mode = #tpu.pipeline_mode<synchronous>, transform_indices = @transform_0, window_bounds = array<i64: 16, 8>}, {pipeline_mode = #tpu.pipeline_mode<synchronous>, transform_indices = @transform_1, window_bounds = array<i64: 8, 32>}, {pipeline_mode = #tpu.pipeline_mode<synchronous>, transform_indices = @transform_2, window_bounds = array<i64: 8, 32>}, {pipeline_mode = #tpu.pipeline_mode<synchronous>, transform_indices = @transform_3, window_bounds = array<i64: 1, 32>}, {pipeline_mode = #tpu.pipeline_mode<synchronous>, transform_indices = @transform_4, window_bounds = array<i64: 1, 8>}, {pipeline_mode = #tpu.pipeline_mode<synchronous>, transform_indices = @transform_5, window_bounds = array<i64: 1, 1>}, {pipeline_mode = #tpu.pipeline_mode<synchronous>, transform_indices = @transform_6, window_bounds = array<i64: 2, 1>}]} {
    %c0 = arith.constant 0 : index
    %c0_0 = arith.constant 0 : index
    %0 = vector.load %arg2[%c0, %c0_0] : memref<8x32xf32, #tpu.memory_space<vmem>>, vector<8x32xf32>
    %c0_1 = arith.constant 0 : index
    %c0_2 = arith.constant 0 : index
    %1 = vector.load %arg3[%c0_1, %c0_2] : memref<8x32xf32, #tpu.memory_space<vmem>>, vector<8x32xf32>
    %c0_3 = arith.constant 0 : index
    %c0_4 = arith.constant 0 : index
    %2 = vector.load %arg4[%c0_3, %c0_4] : memref<1x32xf32, #tpu.memory_space<vmem>>, vector<1x32xf32>
    %c0_5 = arith.constant 0 : index
    %c0_6 = arith.constant 0 : index
    %3 = vector.load %arg1[%c0_5, %c0_6] : memref<16x8xf32, #tpu.memory_space<vmem>>, vector<16x8xf32>
    %cst = arith.constant dense<0.000000e+00> : vector<16x32xf32>
    %4 = tpu.matmul %3, %0, %cst {dimension_numbers = #tpu.dot_dimension_numbers<[1], [0], [0], [1], [0, 0, 1, 1], [], []>} : vector<16x8xf32>, vector<8x32xf32>, vector<16x32xf32> -> vector<16x32xf32>
    %5 = vector.broadcast %2 : vector<1x32xf32> to vector<16x32xf32>
    %6 = arith.addf %4, %5 : vector<16x32xf32>
    %cst_7 = arith.constant 0.000000e+00 : f32
    %7 = vector.broadcast %cst_7 : f32 to vector<2x8xf32>
    %cst_8 = arith.constant 0.000000e+00 : f32
    %8 = vector.broadcast %cst_8 : f32 to vector<2x8xf32>
    %9 = vector.extract_strided_slice %6 {offsets = [0, 0], sizes = [2, 32], strides = [1, 1]} : vector<16x32xf32> to vector<2x32xf32>
    %cst_9 = arith.constant dense<0.000000e+00> : vector<2x32xf32>
    %10 = tpu.matmul %7, %1, %cst_9 {dimension_numbers = #tpu.dot_dimension_numbers<[1], [0], [0], [1], [0, 0, 1, 1], [], []>} : vector<2x8xf32>, vector<8x32xf32>, vector<2x32xf32> -> vector<2x32xf32>
    %11 = arith.addf %9, %10 : vector<2x32xf32>
    %12 = arith.negf %11 : vector<2x32xf32>
    %13 = math.exp %12 : vector<2x32xf32>
    %cst_10 = arith.constant 1.000000e+00 : f32
    %14 = vector.broadcast %cst_10 : f32 to vector<2x32xf32>
    %15 = arith.addf %14, %13 : vector<2x32xf32>
    %16 = arith.divf %14, %15 : vector<2x32xf32>
    %17 = math.tanh %11 : vector<2x32xf32>
    %18 = vector.extract_strided_slice %16 {offsets = [0, 0], sizes = [2, 8], strides = [1, 1]} : vector<2x32xf32> to vector<2x8xf32>
    %19 = vector.extract_strided_slice %16 {offsets = [0, 8], sizes = [2, 8], strides = [1, 1]} : vector<2x32xf32> to vector<2x8xf32>
    %20 = vector.extract_strided_slice %17 {offsets = [0, 16], sizes = [2, 8], strides = [1, 1]} : vector<2x32xf32> to vector<2x8xf32>
    %21 = vector.extract_strided_slice %16 {offsets = [0, 24], sizes = [2, 8], strides = [1, 1]} : vector<2x32xf32> to vector<2x8xf32>
    %22 = arith.mulf %19, %8 : vector<2x8xf32>
    %23 = arith.mulf %18, %20 : vector<2x8xf32>
    %24 = arith.addf %22, %23 : vector<2x8xf32>
    %25 = math.tanh %24 : vector<2x8xf32>
    %26 = arith.mulf %21, %25 : vector<2x8xf32>
    %27 = vector.extract_strided_slice %6 {offsets = [2, 0], sizes = [2, 32], strides = [1, 1]} : vector<16x32xf32> to vector<2x32xf32>
    %cst_11 = arith.constant dense<0.000000e+00> : vector<2x32xf32>
    %28 = tpu.matmul %26, %1, %cst_11 {dimension_numbers = #tpu.dot_dimension_numbers<[1], [0], [0], [1], [0, 0, 1, 1], [], []>} : vector<2x8xf32>, vector<8x32xf32>, vector<2x32xf32> -> vector<2x32xf32>
    %29 = arith.addf %27, %28 : vector<2x32xf32>
    %30 = arith.negf %29 : vector<2x32xf32>
    %31 = math.exp %30 : vector<2x32xf32>
    %cst_12 = arith.constant 1.000000e+00 : f32
    %32 = vector.broadcast %cst_12 : f32 to vector<2x32xf32>
    %33 = arith.addf %32, %31 : vector<2x32xf32>
    %34 = arith.divf %32, %33 : vector<2x32xf32>
    %35 = math.tanh %29 : vector<2x32xf32>
    %36 = vector.extract_strided_slice %34 {offsets = [0, 0], sizes = [2, 8], strides = [1, 1]} : vector<2x32xf32> to vector<2x8xf32>
    %37 = vector.extract_strided_slice %34 {offsets = [0, 8], sizes = [2, 8], strides = [1, 1]} : vector<2x32xf32> to vector<2x8xf32>
    %38 = vector.extract_strided_slice %35 {offsets = [0, 16], sizes = [2, 8], strides = [1, 1]} : vector<2x32xf32> to vector<2x8xf32>
    %39 = vector.extract_strided_slice %34 {offsets = [0, 24], sizes = [2, 8], strides = [1, 1]} : vector<2x32xf32> to vector<2x8xf32>
    %40 = arith.mulf %37, %24 : vector<2x8xf32>
    %41 = arith.mulf %36, %38 : vector<2x8xf32>
    %42 = arith.addf %40, %41 : vector<2x8xf32>
    %43 = math.tanh %42 : vector<2x8xf32>
    %44 = arith.mulf %39, %43 : vector<2x8xf32>
    %45 = vector.extract_strided_slice %6 {offsets = [4, 0], sizes = [2, 32], strides = [1, 1]} : vector<16x32xf32> to vector<2x32xf32>
    %cst_13 = arith.constant dense<0.000000e+00> : vector<2x32xf32>
    %46 = tpu.matmul %44, %1, %cst_13 {dimension_numbers = #tpu.dot_dimension_numbers<[1], [0], [0], [1], [0, 0, 1, 1], [], []>} : vector<2x8xf32>, vector<8x32xf32>, vector<2x32xf32> -> vector<2x32xf32>
    %47 = arith.addf %45, %46 : vector<2x32xf32>
    %48 = arith.negf %47 : vector<2x32xf32>
    %49 = math.exp %48 : vector<2x32xf32>
    %cst_14 = arith.constant 1.000000e+00 : f32
    %50 = vector.broadcast %cst_14 : f32 to vector<2x32xf32>
    %51 = arith.addf %50, %49 : vector<2x32xf32>
    %52 = arith.divf %50, %51 : vector<2x32xf32>
    %53 = math.tanh %47 : vector<2x32xf32>
    %54 = vector.extract_strided_slice %52 {offsets = [0, 0], sizes = [2, 8], strides = [1, 1]} : vector<2x32xf32> to vector<2x8xf32>
    %55 = vector.extract_strided_slice %52 {offsets = [0, 8], sizes = [2, 8], strides = [1, 1]} : vector<2x32xf32> to vector<2x8xf32>
    %56 = vector.extract_strided_slice %53 {offsets = [0, 16], sizes = [2, 8], strides = [1, 1]} : vector<2x32xf32> to vector<2x8xf32>
    %57 = vector.extract_strided_slice %52 {offsets = [0, 24], sizes = [2, 8], strides = [1, 1]} : vector<2x32xf32> to vector<2x8xf32>
    %58 = arith.mulf %55, %42 : vector<2x8xf32>
    %59 = arith.mulf %54, %56 : vector<2x8xf32>
    %60 = arith.addf %58, %59 : vector<2x8xf32>
    %61 = math.tanh %60 : vector<2x8xf32>
    %62 = arith.mulf %57, %61 : vector<2x8xf32>
    %63 = vector.extract_strided_slice %6 {offsets = [6, 0], sizes = [2, 32], strides = [1, 1]} : vector<16x32xf32> to vector<2x32xf32>
    %cst_15 = arith.constant dense<0.000000e+00> : vector<2x32xf32>
    %64 = tpu.matmul %62, %1, %cst_15 {dimension_numbers = #tpu.dot_dimension_numbers<[1], [0], [0], [1], [0, 0, 1, 1], [], []>} : vector<2x8xf32>, vector<8x32xf32>, vector<2x32xf32> -> vector<2x32xf32>
    %65 = arith.addf %63, %64 : vector<2x32xf32>
    %66 = arith.negf %65 : vector<2x32xf32>
    %67 = math.exp %66 : vector<2x32xf32>
    %cst_16 = arith.constant 1.000000e+00 : f32
    %68 = vector.broadcast %cst_16 : f32 to vector<2x32xf32>
    %69 = arith.addf %68, %67 : vector<2x32xf32>
    %70 = arith.divf %68, %69 : vector<2x32xf32>
    %71 = math.tanh %65 : vector<2x32xf32>
    %72 = vector.extract_strided_slice %70 {offsets = [0, 0], sizes = [2, 8], strides = [1, 1]} : vector<2x32xf32> to vector<2x8xf32>
    %73 = vector.extract_strided_slice %70 {offsets = [0, 8], sizes = [2, 8], strides = [1, 1]} : vector<2x32xf32> to vector<2x8xf32>
    %74 = vector.extract_strided_slice %71 {offsets = [0, 16], sizes = [2, 8], strides = [1, 1]} : vector<2x32xf32> to vector<2x8xf32>
    %75 = vector.extract_strided_slice %70 {offsets = [0, 24], sizes = [2, 8], strides = [1, 1]} : vector<2x32xf32> to vector<2x8xf32>
    %76 = arith.mulf %73, %60 : vector<2x8xf32>
    %77 = arith.mulf %72, %74 : vector<2x8xf32>
    %78 = arith.addf %76, %77 : vector<2x8xf32>
    %79 = math.tanh %78 : vector<2x8xf32>
    %80 = arith.mulf %75, %79 : vector<2x8xf32>
    %81 = vector.extract_strided_slice %6 {offsets = [8, 0], sizes = [2, 32], strides = [1, 1]} : vector<16x32xf32> to vector<2x32xf32>
    %cst_17 = arith.constant dense<0.000000e+00> : vector<2x32xf32>
    %82 = tpu.matmul %80, %1, %cst_17 {dimension_numbers = #tpu.dot_dimension_numbers<[1], [0], [0], [1], [0, 0, 1, 1], [], []>} : vector<2x8xf32>, vector<8x32xf32>, vector<2x32xf32> -> vector<2x32xf32>
    %83 = arith.addf %81, %82 : vector<2x32xf32>
    %84 = arith.negf %83 : vector<2x32xf32>
    %85 = math.exp %84 : vector<2x32xf32>
    %cst_18 = arith.constant 1.000000e+00 : f32
    %86 = vector.broadcast %cst_18 : f32 to vector<2x32xf32>
    %87 = arith.addf %86, %85 : vector<2x32xf32>
    %88 = arith.divf %86, %87 : vector<2x32xf32>
    %89 = math.tanh %83 : vector<2x32xf32>
    %90 = vector.extract_strided_slice %88 {offsets = [0, 0], sizes = [2, 8], strides = [1, 1]} : vector<2x32xf32> to vector<2x8xf32>
    %91 = vector.extract_strided_slice %88 {offsets = [0, 8], sizes = [2, 8], strides = [1, 1]} : vector<2x32xf32> to vector<2x8xf32>
    %92 = vector.extract_strided_slice %89 {offsets = [0, 16], sizes = [2, 8], strides = [1, 1]} : vector<2x32xf32> to vector<2x8xf32>
    %93 = vector.extract_strided_slice %88 {offsets = [0, 24], sizes = [2, 8], strides = [1, 1]} : vector<2x32xf32> to vector<2x8xf32>
    %94 = arith.mulf %91, %78 : vector<2x8xf32>
    %95 = arith.mulf %90, %92 : vector<2x8xf32>
    %96 = arith.addf %94, %95 : vector<2x8xf32>
    %97 = math.tanh %96 : vector<2x8xf32>
    %98 = arith.mulf %93, %97 : vector<2x8xf32>
    %99 = vector.extract_strided_slice %6 {offsets = [10, 0], sizes = [2, 32], strides = [1, 1]} : vector<16x32xf32> to vector<2x32xf32>
    %cst_19 = arith.constant dense<0.000000e+00> : vector<2x32xf32>
    %100 = tpu.matmul %98, %1, %cst_19 {dimension_numbers = #tpu.dot_dimension_numbers<[1], [0], [0], [1], [0, 0, 1, 1], [], []>} : vector<2x8xf32>, vector<8x32xf32>, vector<2x32xf32> -> vector<2x32xf32>
    %101 = arith.addf %99, %100 : vector<2x32xf32>
    %102 = arith.negf %101 : vector<2x32xf32>
    %103 = math.exp %102 : vector<2x32xf32>
    %cst_20 = arith.constant 1.000000e+00 : f32
    %104 = vector.broadcast %cst_20 : f32 to vector<2x32xf32>
    %105 = arith.addf %104, %103 : vector<2x32xf32>
    %106 = arith.divf %104, %105 : vector<2x32xf32>
    %107 = math.tanh %101 : vector<2x32xf32>
    %108 = vector.extract_strided_slice %106 {offsets = [0, 0], sizes = [2, 8], strides = [1, 1]} : vector<2x32xf32> to vector<2x8xf32>
    %109 = vector.extract_strided_slice %106 {offsets = [0, 8], sizes = [2, 8], strides = [1, 1]} : vector<2x32xf32> to vector<2x8xf32>
    %110 = vector.extract_strided_slice %107 {offsets = [0, 16], sizes = [2, 8], strides = [1, 1]} : vector<2x32xf32> to vector<2x8xf32>
    %111 = vector.extract_strided_slice %106 {offsets = [0, 24], sizes = [2, 8], strides = [1, 1]} : vector<2x32xf32> to vector<2x8xf32>
    %112 = arith.mulf %109, %96 : vector<2x8xf32>
    %113 = arith.mulf %108, %110 : vector<2x8xf32>
    %114 = arith.addf %112, %113 : vector<2x8xf32>
    %115 = math.tanh %114 : vector<2x8xf32>
    %116 = arith.mulf %111, %115 : vector<2x8xf32>
    %117 = vector.extract_strided_slice %6 {offsets = [12, 0], sizes = [2, 32], strides = [1, 1]} : vector<16x32xf32> to vector<2x32xf32>
    %cst_21 = arith.constant dense<0.000000e+00> : vector<2x32xf32>
    %118 = tpu.matmul %116, %1, %cst_21 {dimension_numbers = #tpu.dot_dimension_numbers<[1], [0], [0], [1], [0, 0, 1, 1], [], []>} : vector<2x8xf32>, vector<8x32xf32>, vector<2x32xf32> -> vector<2x32xf32>
    %119 = arith.addf %117, %118 : vector<2x32xf32>
    %120 = arith.negf %119 : vector<2x32xf32>
    %121 = math.exp %120 : vector<2x32xf32>
    %cst_22 = arith.constant 1.000000e+00 : f32
    %122 = vector.broadcast %cst_22 : f32 to vector<2x32xf32>
    %123 = arith.addf %122, %121 : vector<2x32xf32>
    %124 = arith.divf %122, %123 : vector<2x32xf32>
    %125 = math.tanh %119 : vector<2x32xf32>
    %126 = vector.extract_strided_slice %124 {offsets = [0, 0], sizes = [2, 8], strides = [1, 1]} : vector<2x32xf32> to vector<2x8xf32>
    %127 = vector.extract_strided_slice %124 {offsets = [0, 8], sizes = [2, 8], strides = [1, 1]} : vector<2x32xf32> to vector<2x8xf32>
    %128 = vector.extract_strided_slice %125 {offsets = [0, 16], sizes = [2, 8], strides = [1, 1]} : vector<2x32xf32> to vector<2x8xf32>
    %129 = vector.extract_strided_slice %124 {offsets = [0, 24], sizes = [2, 8], strides = [1, 1]} : vector<2x32xf32> to vector<2x8xf32>
    %130 = arith.mulf %127, %114 : vector<2x8xf32>
    %131 = arith.mulf %126, %128 : vector<2x8xf32>
    %132 = arith.addf %130, %131 : vector<2x8xf32>
    %133 = math.tanh %132 : vector<2x8xf32>
    %134 = arith.mulf %129, %133 : vector<2x8xf32>
    %135 = vector.extract_strided_slice %6 {offsets = [14, 0], sizes = [2, 32], strides = [1, 1]} : vector<16x32xf32> to vector<2x32xf32>
    %cst_23 = arith.constant dense<0.000000e+00> : vector<2x32xf32>
    %136 = tpu.matmul %134, %1, %cst_23 {dimension_numbers = #tpu.dot_dimension_numbers<[1], [0], [0], [1], [0, 0, 1, 1], [], []>} : vector<2x8xf32>, vector<8x32xf32>, vector<2x32xf32> -> vector<2x32xf32>
    %137 = arith.addf %135, %136 : vector<2x32xf32>
    %138 = arith.negf %137 : vector<2x32xf32>
    %139 = math.exp %138 : vector<2x32xf32>
    %cst_24 = arith.constant 1.000000e+00 : f32
    %140 = vector.broadcast %cst_24 : f32 to vector<2x32xf32>
    %141 = arith.addf %140, %139 : vector<2x32xf32>
    %142 = arith.divf %140, %141 : vector<2x32xf32>
    %143 = math.tanh %137 : vector<2x32xf32>
    %144 = vector.extract_strided_slice %142 {offsets = [0, 0], sizes = [2, 8], strides = [1, 1]} : vector<2x32xf32> to vector<2x8xf32>
    %145 = vector.extract_strided_slice %142 {offsets = [0, 8], sizes = [2, 8], strides = [1, 1]} : vector<2x32xf32> to vector<2x8xf32>
    %146 = vector.extract_strided_slice %143 {offsets = [0, 16], sizes = [2, 8], strides = [1, 1]} : vector<2x32xf32> to vector<2x8xf32>
    %147 = vector.extract_strided_slice %142 {offsets = [0, 24], sizes = [2, 8], strides = [1, 1]} : vector<2x32xf32> to vector<2x8xf32>
    %148 = arith.mulf %145, %132 : vector<2x8xf32>
    %149 = arith.mulf %144, %146 : vector<2x8xf32>
    %150 = arith.addf %148, %149 : vector<2x8xf32>
    %151 = math.tanh %150 : vector<2x8xf32>
    %152 = arith.mulf %147, %151 : vector<2x8xf32>
    %153 = math.cos %152 : vector<2x8xf32>
    %154 = math.tanh %153 : vector<2x8xf32>
    %c0_25 = arith.constant 0 : index
    %c0_26 = arith.constant 0 : index
    %155 = vector.load %arg5[%c0_25, %c0_26] : memref<1x8xf32, #tpu.memory_space<vmem>>, vector<1x8xf32>
    %156 = vector.broadcast %155 : vector<1x8xf32> to vector<2x8xf32>
    %157 = arith.mulf %154, %156 : vector<2x8xf32>
    %cst_27 = arith.constant dense<0.000000e+00> : vector<2xf32>
    %158 = vector.multi_reduction <add>, %157, %cst_27 [1] : vector<2x8xf32> to vector<2xf32>
    %159 = vector.shape_cast %158 : vector<2xf32> to vector<2x1xf32>
    %c0_28 = arith.constant 0 : index
    %c0_29 = arith.constant 0 : index
    %160 = vector.load %arg6[%c0_28, %c0_29] : memref<1x1xf32, #tpu.memory_space<vmem>>, vector<1x1xf32>
    %161 = vector.broadcast %160 : vector<1x1xf32> to vector<2x1xf32>
    %162 = arith.addf %159, %161 : vector<2x1xf32>
    %c0_30 = arith.constant 0 : index
    %c0_31 = arith.constant 0 : index
    %163 = vector.load %arg7[%c0_30, %c0_31] : memref<2x1xf32, #tpu.memory_space<vmem>>, vector<2x1xf32>
    tpu.vector_store %arg7[%c0_30, %c0_31], %162 {strides = array<i32>} : memref<2x1xf32, #tpu.memory_space<vmem>>, vector<2x1xf32>,
    return
  }
  func.func @transform_0(%arg0: i32) -> (i32, i32) {
    %c0_i32 = arith.constant 0 : i32
    %c0_i32_0 = arith.constant 0 : i32
    %c0_i32_1 = arith.constant 0 : i32
    return %c0_i32, %c0_i32_0 : i32, i32
  }
  func.func @transform_1(%arg0: i32) -> (i32, i32) {
    %c0_i32 = arith.constant 0 : i32
    %c0_i32_0 = arith.constant 0 : i32
    %c0_i32_1 = arith.constant 0 : i32
    return %c0_i32, %c0_i32_0 : i32, i32
  }
  func.func @transform_2(%arg0: i32) -> (i32, i32) {
    %c0_i32 = arith.constant 0 : i32
    %c0_i32_0 = arith.constant 0 : i32
    %c0_i32_1 = arith.constant 0 : i32
    return %c0_i32, %c0_i32_0 : i32, i32
  }
  func.func @transform_3(%arg0: i32) -> (i32, i32) {
    %c0_i32 = arith.constant 0 : i32
    %c0_i32_0 = arith.constant 0 : i32
    %c0_i32_1 = arith.constant 0 : i32
    return %c0_i32, %c0_i32_0 : i32, i32
  }
  func.func @transform_4(%arg0: i32) -> (i32, i32) {
    %c0_i32 = arith.constant 0 : i32
    %c0_i32_0 = arith.constant 0 : i32
    %c0_i32_1 = arith.constant 0 : i32
    return %c0_i32, %c0_i32_0 : i32, i32
  }
  func.func @transform_5(%arg0: i32) -> (i32, i32) {
    %c0_i32 = arith.constant 0 : i32
    %c0_i32_0 = arith.constant 0 : i32
    %c0_i32_1 = arith.constant 0 : i32
    return %c0_i32, %c0_i32_0 : i32, i32
  }
  func.func @transform_6(%arg0: i32) -> (i32, i32) {
    %c0_i32 = arith.constant 0 : i32
    %c0_i32_0 = arith.constant 0 : i32
    %c0_i32_1 = arith.constant 0 : i32
    return %c0_i32, %c0_i32_0 : i32, i32
  }
}

</mosaic_0001>

<llo_original>
// kernel: tpu_custom_call.1
$region0: #{tpu_custom_call.1}
  #allocation0 [shape = 'u32[]', space=smem, size = 0x4, offset = 0x4, fixed_abs, tag = 'smem constant byte address 0x4 - core index']
  #allocation1 [shape = 'u32[72,128]{1,0:T(1,128)}', space=vmem, size = 0x9000, scoped, tag = 'internal scratch']
  #allocation2 [shape = 'f32[1,1]{1,0:T(1,128)S(1)}', space=vmem, size = 0x200, scoped, tag = 'scoped memory for tpu_custom_call.1']
  %s0 = inlined_call_operand.vmem [shape: f32[16,8], index: 0, kind: input, shape index: {}]
  %s1 = inlined_call_operand.vmem [shape: f32[8,32], index: 1, kind: input, shape index: {}]
  %s2 = inlined_call_operand.vmem [shape: f32[8,32], index: 2, kind: input, shape index: {}]
  %s3 = inlined_call_operand.vmem [shape: f32[1,32], index: 3, kind: input, shape index: {}]
  %s4 = inlined_call_operand.vmem [shape: f32[1,8], index: 4, kind: input, shape index: {}]
  %s5 = inlined_call_operand.<no memory space> [shape: f32[1,1], index: 5, kind: input, shape index: {}]
  %s6 = inlined_call_operand.vmem [shape: f32[2,1], index: 6, kind: output, shape index: {}]
  %s7 = sld [smem:[#allocation0]]
  $region34: #{tpu_custom_call.1} parent=0
    _
  %s9 = ssub.s32 1, %s7
  %s10 = scalar_select 0, %s9, %s7
  %v11 = vstv %s5
  %12 = vst [vmem:[#allocation2] sm:$0x1] %v11
  // Predicated region
  $region2: #{tpu_custom_call.1} parent=0 // pred_check
    _
  $region3: #{tpu_custom_call.1} parent=0 // pred_check_branch
    %14 = sbr.rel (0) target = $region5
  $region4: #{tpu_custom_call.1} parent=0 // pred_region
    _
  $region5: #{tpu_custom_call.1} parent=0 // pred_fallthru
    _
  // Predicated region
  $region6: #{tpu_custom_call.1} parent=0 // pred_check
    _
  $region7: #{tpu_custom_call.1} parent=0 // pred_check_branch
    %16 = sbr.rel (0) target = $region9
  $region8: #{tpu_custom_call.1} parent=0 // pred_region
    _
  $region9: #{tpu_custom_call.1} parent=0 // pred_fallthru
    _
  // Predicated region
  $region10: #{tpu_custom_call.1} parent=0 // pred_check
    _
  $region11: #{tpu_custom_call.1} parent=0 // pred_check_branch
    %18 = sbr.rel (0) target = $region13
  $region12: #{tpu_custom_call.1} parent=0 // pred_region
    _
  $region13: #{tpu_custom_call.1} parent=0 // pred_fallthru
    _
  // Predicated region
  $region14: #{tpu_custom_call.1} parent=0 // pred_check
    _
  $region15: #{tpu_custom_call.1} parent=0 // pred_check_branch
    %20 = sbr.rel (0) target = $region17
  $region16: #{tpu_custom_call.1} parent=0 // pred_region
    _
  $region17: #{tpu_custom_call.1} parent=0 // pred_fallthru
    _
  // Predicated region
  $region18: #{tpu_custom_call.1} parent=0 // pred_check
    _
  $region19: #{tpu_custom_call.1} parent=0 // pred_check_branch
    %22 = sbr.rel (0) target = $region21
  $region20: #{tpu_custom_call.1} parent=0 // pred_region
    _
  $region21: #{tpu_custom_call.1} parent=0 // pred_fallthru
    _
  // Predicated region
  $region22: #{tpu_custom_call.1} parent=0 // pred_check
    _
  $region23: #{tpu_custom_call.1} parent=0 // pred_check_branch
    %24 = sbr.rel (0) target = $region25
  $region24: #{tpu_custom_call.1} parent=0 // pred_region
    _
  $region25: #{tpu_custom_call.1} parent=0 // pred_fallthru
    _
  %v25 = vld [vmem:[%s1] sm:$0xff]
  %v26 = vld [vmem:[%s2] sm:$0xff]
  %v27 = vld [vmem:[%s3] sm:$0x1]
  %v28 = vld [vmem:[%s0] sm:$0xff]
  %v29 = vld [vmem:[%s0 + $0x8] sm:$0xff]
  %v31 = vperm.slane %v27, 0
  %vm33 = vcmask 64512
  %v35 = vsel %vm33, %v28, 0
  %v38 = vsel %vm33, %v29, 0
  %40 = vmatpush.msra.mxu0 0.0
  %41 = vmatpush.msra.mxu0 0.0
  %42 = vmatpush.msra.mxu0 0.0
  %43 = vmatpush.msra.mxu0 0.0
  %44 = vmatpush.msra.mxu0 0.0
  %45 = vmatpush.msra.mxu0 0.0
  %46 = vmatpush.msra.mxu0 0.0
  %47 = vmatpush.msra.mxu0 0.0
  %48 = vmatpush.msra.mxu0 0.0
  %49 = vmatpush.msra.mxu0 0.0
  %50 = vmatpush.msra.mxu0 0.0
  %51 = vmatpush.msra.mxu0 0.0
  %52 = vmatpush.msra.mxu0 0.0
  %53 = vmatpush.msra.mxu0 0.0
  %54 = vmatpush.msra.mxu0 0.0
  %55 = vmatpush.msra.mxu0 %v25
  %56 = vmatmul.f32.gmra.mxu0 %v35
  %v57 = vpop.f32.mrf.mxu0
  %v58 = vadd.f32 %v31, %v57
  %59 = vmatmul.f32.gmra.mxu0 %v38
  %v60 = vpop.f32.mrf.mxu0
  %v61 = vadd.f32 %v31, %v60
  %62 = vdwg.mxu0
  %v64 = vsel %vm33, 0.0, 0
  %66 = vmatpush.msra.mxu0 0.0
  %67 = vmatpush.msra.mxu0 0.0
  %68 = vmatpush.msra.mxu0 0.0
  %69 = vmatpush.msra.mxu0 0.0
  %70 = vmatpush.msra.mxu0 0.0
  %71 = vmatpush.msra.mxu0 0.0
  %72 = vmatpush.msra.mxu0 0.0
  %73 = vmatpush.msra.mxu0 0.0
  %74 = vmatpush.msra.mxu0 0.0
  %75 = vmatpush.msra.mxu0 0.0
  %76 = vmatpush.msra.mxu0 0.0
  %77 = vmatpush.msra.mxu0 0.0
  %78 = vmatpush.msra.mxu0 0.0
  %79 = vmatpush.msra.mxu0 0.0
  %80 = vmatpush.msra.mxu0 0.0
  %81 = vmatpush.msra.mxu0 %v26
  %82 = vmatmul.f32.gmra.mxu0 %v64
  %v83 = vpop.f32.mrf.mxu0
  %v84 = vadd.f32 0.0, %v83
  %85 = vdwg.mxu0
  %v86 = vadd.f32 %v58, %v84
  %v87 = vxor.u32 %v86, 2147483648
  %v88 = vmul.f32 %v87, 1.442695
  %v89 = vpow.pop %v88
  %v90 = vadd.f32 %v89, 1.0
  %v91 = vrcp.pop %v90
  %v92 = vmul.f32 %v90, %v91
  %v93 = vsub.f32 1.0, %v92
  %v94 = vmul.f32 %v91, %v93
  %v95 = vadd.f32 %v91, %v94
  %vm96 = vweird.f32 %v90
  %vm97 = vweird.f32 %v91
  %vm98 = vmor %vm96, %vm97
  %v99 = vsel %vm98, %v91, %v95
  %v100 = vand.u32 2147483647, %v90
  %vm101 = vcmp.eq.f32.partialorder %v100, 8.507059e+37
  %v102 = vand.u32 %v90, 2147483648
  %v103 = vor.u32 1.1754944e-38, %v102
  %v104 = vsel %vm101, %v103, %v99
  %v105 = vmul.f32 1.0, %v104
  %v106 = vtanh.pop %v86
  %v107 = vmul.f32 %v105, 0.0
  %109 = vrot.lane.b32.xlu0 %v106, 112
  %v110 = vpop.permute.xlu0 %109
  %v112 = vmul.f32 %v105, %v110
  %114 = vrot.lane.b32.xlu0 %v112, 8
  %v115 = vpop.permute.xlu0 %114
  %v117 = vadd.f32 %v107, %v115
  %v118 = vtanh.pop %v117
  %120 = vrot.lane.b32.xlu0 %v118, 16
  %v121 = vpop.permute.xlu0 %120
  %v123 = vmul.f32 %v105, %v121
  %125 = vrot.lane.b32.xlu0 %v123, 104
  %v126 = vpop.permute.xlu0 %125
  %v127 = vsel %vm33, %v126, 0
  %129 = vmatpush.msra.mxu0 0.0
  %130 = vmatpush.msra.mxu0 0.0
  %131 = vmatpush.msra.mxu0 0.0
  %132 = vmatpush.msra.mxu0 0.0
  %133 = vmatpush.msra.mxu0 0.0
  %134 = vmatpush.msra.mxu0 0.0
  %135 = vmatpush.msra.mxu0 0.0
  %136 = vmatpush.msra.mxu0 0.0
  %137 = vmatpush.msra.mxu0 0.0
  %138 = vmatpush.msra.mxu0 0.0
  %139 = vmatpush.msra.mxu0 0.0
  %140 = vmatpush.msra.mxu0 0.0
  %141 = vmatpush.msra.mxu0 0.0
  %142 = vmatpush.msra.mxu0 0.0
  %143 = vmatpush.msra.mxu0 0.0
  %144 = vmatpush.msra.mxu0 %v26
  %145 = vmatmul.f32.gmra.mxu0 %v127
  %v146 = vpop.f32.mrf.mxu0
  %v147 = vadd.f32 0.0, %v146
  %148 = vdwg.mxu0
  %v150 = vrot.slane %v147, 6
  %v152 = vadd.f32 %v58, %v150
  %v153 = vxor.u32 %v152, 2147483648
  %v154 = vmul.f32 %v153, 1.442695
  %v155 = vpow.pop %v154
  %v156 = vadd.f32 %v155, 1.0
  %v157 = vrcp.pop %v156
  %v158 = vmul.f32 %v156, %v157
  %v159 = vsub.f32 1.0, %v158
  %v160 = vmul.f32 %v157, %v159
  %v161 = vadd.f32 %v157, %v160
  %vm162 = vweird.f32 %v156
  %vm163 = vweird.f32 %v157
  %vm164 = vmor %vm162, %vm163
  %v165 = vsel %vm164, %v157, %v161
  %v166 = vand.u32 2147483647, %v156
  %vm167 = vcmp.eq.f32.partialorder %v166, 8.507059e+37
  %v168 = vand.u32 %v156, 2147483648
  %v169 = vor.u32 1.1754944e-38, %v168
  %v170 = vsel %vm167, %v169, %v165
  %v171 = vmul.f32 1.0, %v170
  %v172 = vtanh.pop %v152
  %v174 = vrot.slane %v117, 6
  %v176 = vmul.f32 %v171, %v174
  %178 = vrot.lane.b32.xlu0 %v172, 112
  %v179 = vpop.permute.xlu0 %178
  %v181 = vmul.f32 %v171, %v179
  %183 = vrot.lane.b32.xlu0 %v181, 8
  %v184 = vpop.permute.xlu0 %183
  %v186 = vadd.f32 %v176, %v184
  %v187 = vtanh.pop %v186
  %189 = vrot.lane.b32.xlu0 %v187, 16
  %v190 = vpop.permute.xlu0 %189
  %v192 = vmul.f32 %v171, %v190
  %v194 = vrot.slane %v192, 2
  %195 = vrot.lane.b32.xlu0 %v194, 104
  %v196 = vpop.permute.xlu0 %195
  %v197 = vsel %vm33, %v196, 0
  %199 = vmatpush.msra.mxu0 0.0
  %200 = vmatpush.msra.mxu0 0.0
  %201 = vmatpush.msra.mxu0 0.0
  %202 = vmatpush.msra.mxu0 0.0
  %203 = vmatpush.msra.mxu0 0.0
  %204 = vmatpush.msra.mxu0 0.0
  %205 = vmatpush.msra.mxu0 0.0
  %206 = vmatpush.msra.mxu0 0.0
  %207 = vmatpush.msra.mxu0 0.0
  %208 = vmatpush.msra.mxu0 0.0
  %209 = vmatpush.msra.mxu0 0.0
  %210 = vmatpush.msra.mxu0 0.0
  %211 = vmatpush.msra.mxu0 0.0
  %212 = vmatpush.msra.mxu0 0.0
  %213 = vmatpush.msra.mxu0 0.0
  %214 = vmatpush.msra.mxu0 %v26
  %215 = vmatmul.f32.gmra.mxu0 %v197
  %v216 = vpop.f32.mrf.mxu0
  %v217 = vadd.f32 0.0, %v216
  %218 = vdwg.mxu0
  %v220 = vrot.slane %v217, 4
  %v222 = vadd.f32 %v58, %v220
  %v223 = vxor.u32 %v222, 2147483648
  %v224 = vmul.f32 %v223, 1.442695
  %v225 = vpow.pop %v224
  %v226 = vadd.f32 %v225, 1.0
  %v227 = vrcp.pop %v226
  %v228 = vmul.f32 %v226, %v227
  %v229 = vsub.f32 1.0, %v228
  %v230 = vmul.f32 %v227, %v229
  %v231 = vadd.f32 %v227, %v230
  %vm232 = vweird.f32 %v226
  %vm233 = vweird.f32 %v227
  %vm234 = vmor %vm232, %vm233
  %v235 = vsel %vm234, %v227, %v231
  %v236 = vand.u32 2147483647, %v226
  %vm237 = vcmp.eq.f32.partialorder %v236, 8.507059e+37
  %v238 = vand.u32 %v226, 2147483648
  %v239 = vor.u32 1.1754944e-38, %v238
  %v240 = vsel %vm237, %v239, %v235
  %v241 = vmul.f32 1.0, %v240
  %v242 = vtanh.pop %v222
  %v244 = vrot.slane %v186, 6
  %v246 = vmul.f32 %v241, %v244
  %248 = vrot.lane.b32.xlu0 %v242, 112
  %v249 = vpop.permute.xlu0 %248
  %v251 = vmul.f32 %v241, %v249
  %253 = vrot.lane.b32.xlu0 %v251, 8
  %v254 = vpop.permute.xlu0 %253
  %v256 = vadd.f32 %v246, %v254
  %v257 = vtanh.pop %v256
  %259 = vrot.lane.b32.xlu0 %v257, 16
  %v260 = vpop.permute.xlu0 %259
  %v262 = vmul.f32 %v241, %v260
  %v264 = vrot.slane %v262, 4
  %265 = vrot.lane.b32.xlu0 %v264, 104
  %v266 = vpop.permute.xlu0 %265
  %v267 = vsel %vm33, %v266, 0
  %269 = vmatpush.msra.mxu0 0.0
  %270 = vmatpush.msra.mxu0 0.0
  %271 = vmatpush.msra.mxu0 0.0
  %272 = vmatpush.msra.mxu0 0.0
  %273 = vmatpush.msra.mxu0 0.0
  %274 = vmatpush.msra.mxu0 0.0
  %275 = vmatpush.msra.mxu0 0.0
  %276 = vmatpush.msra.mxu0 0.0
  %277 = vmatpush.msra.mxu0 0.0
  %278 = vmatpush.msra.mxu0 0.0
  %279 = vmatpush.msra.mxu0 0.0
  %280 = vmatpush.msra.mxu0 0.0
  %281 = vmatpush.msra.mxu0 0.0
  %282 = vmatpush.msra.mxu0 0.0
  %283 = vmatpush.msra.mxu0 0.0
  %284 = vmatpush.msra.mxu0 %v26
  %285 = vmatmul.f32.gmra.mxu0 %v267
  %v286 = vpop.f32.mrf.mxu0
  %v287 = vadd.f32 0.0, %v286
  %288 = vdwg.mxu0
  %v290 = vrot.slane %v287, 2
  %v292 = vadd.f32 %v58, %v290
  %v293 = vxor.u32 %v292, 2147483648
  %v294 = vmul.f32 %v293, 1.442695
  %v295 = vpow.pop %v294
  %v296 = vadd.f32 %v295, 1.0
  %v297 = vrcp.pop %v296
  %v298 = vmul.f32 %v296, %v297
  %v299 = vsub.f32 1.0, %v298
  %v300 = vmul.f32 %v297, %v299
  %v301 = vadd.f32 %v297, %v300
  %vm302 = vweird.f32 %v296
  %vm303 = vweird.f32 %v297
  %vm304 = vmor %vm302, %vm303
  %v305 = vsel %vm304, %v297, %v301
  %v306 = vand.u32 2147483647, %v296
  %vm307 = vcmp.eq.f32.partialorder %v306, 8.507059e+37
  %v308 = vand.u32 %v296, 2147483648
  %v309 = vor.u32 1.1754944e-38, %v308
  %v310 = vsel %vm307, %v309, %v305
  %v311 = vmul.f32 1.0, %v310
  %v312 = vtanh.pop %v292
  %v314 = vrot.slane %v256, 6
  %v316 = vmul.f32 %v311, %v314
  %318 = vrot.lane.b32.xlu0 %v312, 112
  %v319 = vpop.permute.xlu0 %318
  %v321 = vmul.f32 %v311, %v319
  %323 = vrot.lane.b32.xlu0 %v321, 8
  %v324 = vpop.permute.xlu0 %323
  %v326 = vadd.f32 %v316, %v324
  %v327 = vtanh.pop %v326
  %329 = vrot.lane.b32.xlu0 %v327, 16
  %v330 = vpop.permute.xlu0 %329
  %v332 = vmul.f32 %v311, %v330
  %v334 = vrot.slane %v332, 6
  %335 = vrot.lane.b32.xlu0 %v334, 104
  %v336 = vpop.permute.xlu0 %335
  %v337 = vsel %vm33, %v336, 0
  %339 = vmatpush.msra.mxu0 0.0
  %340 = vmatpush.msra.mxu0 0.0
  %341 = vmatpush.msra.mxu0 0.0
  %342 = vmatpush.msra.mxu0 0.0
  %343 = vmatpush.msra.mxu0 0.0
  %344 = vmatpush.msra.mxu0 0.0
  %345 = vmatpush.msra.mxu0 0.0
  %346 = vmatpush.msra.mxu0 0.0
  %347 = vmatpush.msra.mxu0 0.0
  %348 = vmatpush.msra.mxu0 0.0
  %349 = vmatpush.msra.mxu0 0.0
  %350 = vmatpush.msra.mxu0 0.0
  %351 = vmatpush.msra.mxu0 0.0
  %352 = vmatpush.msra.mxu0 0.0
  %353 = vmatpush.msra.mxu0 0.0
  %354 = vmatpush.msra.mxu0 %v26
  %355 = vmatmul.f32.gmra.mxu0 %v337
  %v356 = vpop.f32.mrf.mxu0
  %v357 = vadd.f32 0.0, %v356
  %358 = vdwg.mxu0
  %v359 = vadd.f32 %v61, %v357
  %v360 = vxor.u32 %v359, 2147483648
  %v361 = vmul.f32 %v360, 1.442695
  %v362 = vpow.pop %v361
  %v363 = vadd.f32 %v362, 1.0
  %v364 = vrcp.pop %v363
  %v365 = vmul.f32 %v363, %v364
  %v366 = vsub.f32 1.0, %v365
  %v367 = vmul.f32 %v364, %v366
  %v368 = vadd.f32 %v364, %v367
  %vm369 = vweird.f32 %v363
  %vm370 = vweird.f32 %v364
  %vm371 = vmor %vm369, %vm370
  %v372 = vsel %vm371, %v364, %v368
  %v373 = vand.u32 2147483647, %v363
  %vm374 = vcmp.eq.f32.partialorder %v373, 8.507059e+37
  %v375 = vand.u32 %v363, 2147483648
  %v376 = vor.u32 1.1754944e-38, %v375
  %v377 = vsel %vm374, %v376, %v372
  %v378 = vmul.f32 1.0, %v377
  %v379 = vtanh.pop %v359
  %v381 = vrot.slane %v326, 6
  %v383 = vmul.f32 %v378, %v381
  %385 = vrot.lane.b32.xlu0 %v379, 112
  %v386 = vpop.permute.xlu0 %385
  %v388 = vmul.f32 %v378, %v386
  %390 = vrot.lane.b32.xlu0 %v388, 8
  %v391 = vpop.permute.xlu0 %390
  %v393 = vadd.f32 %v383, %v391
  %v394 = vtanh.pop %v393
  %396 = vrot.lane.b32.xlu0 %v394, 16
  %v397 = vpop.permute.xlu0 %396
  %v399 = vmul.f32 %v378, %v397
  %401 = vrot.lane.b32.xlu0 %v399, 104
  %v402 = vpop.permute.xlu0 %401
  %v403 = vsel %vm33, %v402, 0
  %405 = vmatpush.msra.mxu0 0.0
  %406 = vmatpush.msra.mxu0 0.0
  %407 = vmatpush.msra.mxu0 0.0
  %408 = vmatpush.msra.mxu0 0.0
  %409 = vmatpush.msra.mxu0 0.0
  %410 = vmatpush.msra.mxu0 0.0
  %411 = vmatpush.msra.mxu0 0.0
  %412 = vmatpush.msra.mxu0 0.0
  %413 = vmatpush.msra.mxu0 0.0
  %414 = vmatpush.msra.mxu0 0.0
  %415 = vmatpush.msra.mxu0 0.0
  %416 = vmatpush.msra.mxu0 0.0
  %417 = vmatpush.msra.mxu0 0.0
  %418 = vmatpush.msra.mxu0 0.0
  %419 = vmatpush.msra.mxu0 0.0
  %420 = vmatpush.msra.mxu0 %v26
  %421 = vmatmul.f32.gmra.mxu0 %v403
  %v422 = vpop.f32.mrf.mxu0
  %v423 = vadd.f32 0.0, %v422
  %424 = vdwg.mxu0
  %v426 = vrot.slane %v423, 6
  %v428 = vadd.f32 %v61, %v426
  %v429 = vxor.u32 %v428, 2147483648
  %v430 = vmul.f32 %v429, 1.442695
  %v431 = vpow.pop %v430
  %v432 = vadd.f32 %v431, 1.0
  %v433 = vrcp.pop %v432
  %v434 = vmul.f32 %v432, %v433
  %v435 = vsub.f32 1.0, %v434
  %v436 = vmul.f32 %v433, %v435
  %v437 = vadd.f32 %v433, %v436
  %vm438 = vweird.f32 %v432
  %vm439 = vweird.f32 %v433
  %vm440 = vmor %vm438, %vm439
  %v441 = vsel %vm440, %v433, %v437
  %v442 = vand.u32 2147483647, %v432
  %vm443 = vcmp.eq.f32.partialorder %v442, 8.507059e+37
  %v444 = vand.u32 %v432, 2147483648
  %v445 = vor.u32 1.1754944e-38, %v444
  %v446 = vsel %vm443, %v445, %v441
  %v447 = vmul.f32 1.0, %v446
  %v448 = vtanh.pop %v428
  %v450 = vrot.slane %v393, 6
  %v452 = vmul.f32 %v447, %v450
  %454 = vrot.lane.b32.xlu0 %v448, 112
  %v455 = vpop.permute.xlu0 %454
  %v457 = vmul.f32 %v447, %v455
  %459 = vrot.lane.b32.xlu0 %v457, 8
  %v460 = vpop.permute.xlu0 %459
  %v462 = vadd.f32 %v452, %v460
  %v463 = vtanh.pop %v462
  %465 = vrot.lane.b32.xlu0 %v463, 16
  %v466 = vpop.permute.xlu0 %465
  %v468 = vmul.f32 %v447, %v466
  %v470 = vrot.slane %v468, 2
  %471 = vrot.lane.b32.xlu0 %v470, 104
  %v472 = vpop.permute.xlu0 %471
  %v473 = vsel %vm33, %v472, 0
  %475 = vmatpush.msra.mxu0 0.0
  %476 = vmatpush.msra.mxu0 0.0
  %477 = vmatpush.msra.mxu0 0.0
  %478 = vmatpush.msra.mxu0 0.0
  %479 = vmatpush.msra.mxu0 0.0
  %480 = vmatpush.msra.mxu0 0.0
  %481 = vmatpush.msra.mxu0 0.0
  %482 = vmatpush.msra.mxu0 0.0
  %483 = vmatpush.msra.mxu0 0.0
  %484 = vmatpush.msra.mxu0 0.0
  %485 = vmatpush.msra.mxu0 0.0
  %486 = vmatpush.msra.mxu0 0.0
  %487 = vmatpush.msra.mxu0 0.0
  %488 = vmatpush.msra.mxu0 0.0
  %489 = vmatpush.msra.mxu0 0.0
  %490 = vmatpush.msra.mxu0 %v26
  %491 = vmatmul.f32.gmra.mxu0 %v473
  %v492 = vpop.f32.mrf.mxu0
  %v493 = vadd.f32 0.0, %v492
  %494 = vdwg.mxu0
  %v496 = vrot.slane %v493, 4
  %v498 = vadd.f32 %v61, %v496
  %v499 = vxor.u32 %v498, 2147483648
  %v500 = vmul.f32 %v499, 1.442695
  %v501 = vpow.pop %v500
  %v502 = vadd.f32 %v501, 1.0
  %v503 = vrcp.pop %v502
  %v504 = vmul.f32 %v502, %v503
  %v505 = vsub.f32 1.0, %v504
  %v506 = vmul.f32 %v503, %v505
  %v507 = vadd.f32 %v503, %v506
  %vm508 = vweird.f32 %v502
  %vm509 = vweird.f32 %v503
  %vm510 = vmor %vm508, %vm509
  %v511 = vsel %vm510, %v503, %v507
  %v512 = vand.u32 2147483647, %v502
  %vm513 = vcmp.eq.f32.partialorder %v512, 8.507059e+37
  %v514 = vand.u32 %v502, 2147483648
  %v515 = vor.u32 1.1754944e-38, %v514
  %v516 = vsel %vm513, %v515, %v511
  %v517 = vmul.f32 1.0, %v516
  %v518 = vtanh.pop %v498
  %v520 = vrot.slane %v462, 6
  %v522 = vmul.f32 %v517, %v520
  %524 = vrot.lane.b32.xlu0 %v518, 112
  %v525 = vpop.permute.xlu0 %524
  %v527 = vmul.f32 %v517, %v525
  %529 = vrot.lane.b32.xlu0 %v527, 8
  %v530 = vpop.permute.xlu0 %529
  %v532 = vadd.f32 %v522, %v530
  %v533 = vtanh.pop %v532
  %535 = vrot.lane.b32.xlu0 %v533, 16
  %v536 = vpop.permute.xlu0 %535
  %v538 = vmul.f32 %v517, %v536
  %v540 = vrot.slane %v538, 4
  %541 = vrot.lane.b32.xlu0 %v540, 104
  %v542 = vpop.permute.xlu0 %541
  %v543 = vsel %vm33, %v542, 0
  %545 = vmatpush.msra.mxu0 0.0
  %546 = vmatpush.msra.mxu0 0.0
  %547 = vmatpush.msra.mxu0 0.0
  %548 = vmatpush.msra.mxu0 0.0
  %549 = vmatpush.msra.mxu0 0.0
  %550 = vmatpush.msra.mxu0 0.0
  %551 = vmatpush.msra.mxu0 0.0
  %552 = vmatpush.msra.mxu0 0.0
  %553 = vmatpush.msra.mxu0 0.0
  %554 = vmatpush.msra.mxu0 0.0
  %555 = vmatpush.msra.mxu0 0.0
  %556 = vmatpush.msra.mxu0 0.0
  %557 = vmatpush.msra.mxu0 0.0
  %558 = vmatpush.msra.mxu0 0.0
  %559 = vmatpush.msra.mxu0 0.0
  %560 = vmatpush.msra.mxu0 %v26
  %561 = vmatmul.f32.gmra.mxu0 %v543
  %v562 = vpop.f32.mrf.mxu0
  %v563 = vadd.f32 0.0, %v562
  %564 = vdwg.mxu0
  %v566 = vrot.slane %v563, 2
  %v568 = vadd.f32 %v61, %v566
  %v569 = vxor.u32 %v568, 2147483648
  %v570 = vmul.f32 %v569, 1.442695
  %v571 = vpow.pop %v570
  %v572 = vadd.f32 %v571, 1.0
  %v573 = vrcp.pop %v572
  %v574 = vmul.f32 %v572, %v573
  %v575 = vsub.f32 1.0, %v574
  %v576 = vmul.f32 %v573, %v575
  %v577 = vadd.f32 %v573, %v576
  %vm578 = vweird.f32 %v572
  %vm579 = vweird.f32 %v573
  %vm580 = vmor %vm578, %vm579
  %v581 = vsel %vm580, %v573, %v577
  %v582 = vand.u32 2147483647, %v572
  %vm583 = vcmp.eq.f32.partialorder %v582, 8.507059e+37
  %v584 = vand.u32 %v572, 2147483648
  %v585 = vor.u32 1.1754944e-38, %v584
  %v586 = vsel %vm583, %v585, %v581
  %v587 = vmul.f32 1.0, %v586
  %v588 = vtanh.pop %v568
  %v590 = vrot.slane %v532, 6
  %v592 = vmul.f32 %v587, %v590
  %594 = vrot.lane.b32.xlu0 %v588, 112
  %v595 = vpop.permute.xlu0 %594
  %v597 = vmul.f32 %v587, %v595
  %599 = vrot.lane.b32.xlu0 %v597, 8
  %v600 = vpop.permute.xlu0 %599
  %v602 = vadd.f32 %v592, %v600
  %v603 = vtanh.pop %v602
  %605 = vrot.lane.b32.xlu0 %v603, 16
  %v606 = vpop.permute.xlu0 %605
  %v608 = vmul.f32 %v587, %v606
  %v609 = vand.u32 2147483647, %v608
  %vm610 = vcmp.le.f32.partialorder %v609, 0.7853982
  %vm611 = vcmp.lt.s32.totalorder %v608, 0
  %v612 = vand.u32 %v608, 2139095040
  %v613 = vshrl.u32 %v612, 23
  %v614 = vsub.s32 %v613, 127
  %v615 = vand.u32 2147483647, %v608
  %v616 = vand.u32 %v615, 8388607
  %v617 = vor.u32 %v616, 8388608
  %v618 = vsub.s32 0, %v617
  %v619 = vadd.s32 %v614, 1
  %vm620 = vcmp.gt.s32.totalorder %v619, 0
  %v621 = vsel %vm620, %v619, 0
  %v622 = vshrl.u32 %v621, 5
  %v623 = vand.u32 %v621, 31
  %v624 = vsub.s32 32, %v623
  %v625 = vshrl.u32 683565275, %v624
  %v626 = vshll.u32 683565275, %v623
  %v627 = vshrl.u32 2475754826, %v624
  %v628 = vor.u32 %v626, %v627
  %v629 = vshll.u32 2475754826, %v623
  %v630 = vshrl.u32 2131351028, %v624
  %v631 = vor.u32 %v629, %v630
  %v632 = vshll.u32 2131351028, %v623
  %v633 = vshrl.u32 2102212464, %v624
  %v634 = vor.u32 %v632, %v633
  %v635 = vshll.u32 2102212464, %v623
  %v636 = vshrl.u32 920167782, %v624
  %v637 = vor.u32 %v635, %v636
  %v638 = vshll.u32 920167782, %v623
  %v639 = vshrl.u32 1326507024, %v624
  %v640 = vor.u32 %v638, %v639
  %vm641 = vcmp.lt.s32.totalorder %v622, 1
  %vm642 = vcmp.lt.s32.totalorder %v622, 2
  %vm643 = vcmp.lt.s32.totalorder %v622, 3
  %vm644 = vcmp.lt.s32.totalorder %v622, 4
  %v645 = vsel %vm641, %v625, %v628
  %v646 = vsel %vm644, %v634, 2102212464
  %v647 = vsel %vm643, %v631, %v646
  %v648 = vsel %vm642, %v645, %v647
  %v649 = vsel %vm641, %v628, %v631
  %v650 = vsel %vm644, %v637, 920167782
  %v651 = vsel %vm643, %v634, %v650
  %v652 = vsel %vm642, %v649, %v651
  %v653 = vsel %vm641, %v631, %v634
  %v654 = vsel %vm644, %v640, 1326507024
  %v655 = vsel %vm643, %v637, %v654
  %v656 = vsel %vm642, %v653, %v655
  %v657 = vshll.u32 %v617, 8
  %v658 = vand.u32 %v657, 65535
  %v659 = vshrl.u32 %v657, 16
  %v660 = vand.u32 %v656, 65535
  %v661 = vshrl.u32 %v656, 16
  %v662 = vmul.u32 %v658, %v660
  %v663 = vmul.u32 %v658, %v661
  %v664 = vmul.u32 %v659, %v660
  %v665 = vmul.u32 %v659, %v661
  %v666 = vshll.u32 %v663, 16
  %v667 = vshrl.u32 %v663, 16
  %v668 = vshll.u32 %v664, 16
  %v669 = vshrl.u32 %v664, 16
  %vm670 = vc.u32 %v662, %v666
  %v671 = vsel %vm670, 1, 0
  %v672 = vadd.s32 %v662, %v666
  %v673 = vadd.s32 %v665, %v671
  %vm674 = vc.u32 %v672, %v668
  %v675 = vsel %vm674, 1, 0
  %v676 = vadd.s32 %v672, %v668
  %v677 = vadd.s32 %v673, %v675
  %v678 = vadd.s32 %v677, %v667
  %v679 = vadd.s32 %v678, %v669
  %v680 = vand.u32 %v657, 65535
  %v681 = vshrl.u32 %v657, 16
  %v682 = vand.u32 %v652, 65535
  %v683 = vshrl.u32 %v652, 16
  %v684 = vmul.u32 %v680, %v682
  %v685 = vmul.u32 %v680, %v683
  %v686 = vmul.u32 %v681, %v682
  %v687 = vmul.u32 %v681, %v683
  %v688 = vshll.u32 %v685, 16
  %v689 = vshrl.u32 %v685, 16
  %v690 = vshll.u32 %v686, 16
  %v691 = vshrl.u32 %v686, 16
  %vm692 = vc.u32 %v684, %v688
  %v693 = vsel %vm692, 1, 0
  %v694 = vadd.s32 %v684, %v688
  %v695 = vadd.s32 %v687, %v693
  %vm696 = vc.u32 %v694, %v690
  %v697 = vsel %vm696, 1, 0
  %v698 = vadd.s32 %v694, %v690
  %v699 = vadd.s32 %v695, %v697
  %v700 = vadd.s32 %v699, %v689
  %v701 = vadd.s32 %v700, %v691
  %v702 = vmul.u32 %v657, %v648
  %v703 = vadd.s32 %v679, %v698
  %vm704 = vc.u32 %v679, %v698
  %v705 = vadd.s32 %v701, 1
  %v706 = vsel %vm704, %v705, %v701
  %v707 = vadd.s32 %v702, %v706
  %v708 = vadd.s32 %v707, 536870912
  %v709 = vshrl.u32 %v708, 30
  %v710 = vshll.u32 %v709, 30
  %v711 = vsub.s32 %v707, %v710
  %vm712 = vcmp.lt.s32.totalorder %v711, 0
  %v713 = vsub.s32 0, %v711
  %v714 = vsel %vm712, %v713, %v711
  %v715 = vclz %v714
  %v716 = vsub.s32 %v715, 2
  %vm717 = vcmp.gt.s32.totalorder 0, %v716
  %v718 = vsel %vm717, 0, %v716
  %v719 = vsub.s32 32, %v718
  %v720 = vshll.u32 %v711, %v718
  %v721 = vshrl.u32 %v703, %v719
  %v722 = vor.u32 %v720, %v721
  %v723 = vsub.s32 4294967266, %v718
  %v724 = vadd.s32 %v723, 127
  %v725 = vshll.u32 %v724, 23
  %v726 = vor.u32 4788187, %v725
  %v727 = vand.u32 2147483647, %v726
  %v729 = vcvt.s32.f32 %v722
  %v730 = vmul.f32 %v729, %v727
  %v731 = vxor.u32 %v730, 2147483648
  %v732 = vsel %vm611, %v731, %v730
  %v733 = vsub.s32 4, %v709
  %v734 = vsel %vm611, %v733, %v709
  %v735 = vsel %vm610, %v608, %v732
  %v736 = vsel %vm610, 0, %v734
  %v737 = vmul.f32 %v735, %v735
  %v738 = vmul.f32 %v737, -0.001358992
  %v739 = vadd.f32 %v738, 0.041655596
  %v740 = vmul.f32 %v737, %v739
  %v741 = vadd.f32 %v740, -0.4999988
  %v742 = vmul.f32 %v737, %v741
  %v743 = vadd.f32 1.0, %v742
  %v744 = vmul.f32 %v735, %v735
  %v745 = vmul.f32 %v744, -0.00019511016
  %v746 = vadd.f32 %v745, 0.008332121
  %v747 = vmul.f32 %v744, %v746
  %v748 = vadd.f32 %v747, -0.16666654
  %v749 = vmul.f32 %v744, %v748
  %v750 = vadd.f32 %v749, 1.0
  %v751 = vmul.f32 %v750, %v735
  %vm752 = vweird.f32 %v608
  %v753 = vand.u32 %v736, 3
  %vm754 = vcmp.lt.s32.totalorder %v753, 2
  %vm755 = vcmp.eq.s32.totalorder %v753, 0
  %v756 = vxor.u32 %v751, 2147483648
  %v757 = vsel %vm755, %v743, %v756
  %vm758 = vcmp.eq.s32.totalorder %v753, 2
  %v759 = vxor.u32 %v743, 2147483648
  %v760 = vsel %vm758, %v759, %v751
  %v761 = vsel %vm754, %v757, %v760
  %v762 = vsel %vm752, nan, %v761
  %v763 = vtanh.pop %v762
  %v764 = vld [vmem:[%s4] sm:$0x1]
  %v766 = vperm.slane %v764, 0
  %767 = vrot.lane.b32.xlu0 %v766, 24
  %v768 = vpop.permute.xlu0 %767
  %v770 = vmul.f32 %v763, %v768
  %772 = vrot.lane.b32.xlu0 %v770, 104
  %v773 = vpop.permute.xlu0 %772
  %vm775 = vcmask 64518
  %v776 = vsel %vm775, %v773, 0.0
  %777 = vadd.xlane.f32.xlu0 %v776
  %v778 = vpop.xlane.xlu0 %777
  %v779 = vld [vmem:[#allocation2] sm:$0x1]
  %v781 = vperm.slane %v779, 0
  %v783 = vadd.f32 %v778, %v781
  %vm784 = vcmask 7174
  %785 = vst.msk [vmem:[%s6 - $0x6] sm:$0xc0] %vm784, %v783
  // Predicated region
  $region26: #{tpu_custom_call.1} parent=0 // pred_check
    _
  $region27: #{tpu_custom_call.1} parent=0 // pred_check_branch
    %787 = sbr.rel (0) target = $region29
  $region28: #{tpu_custom_call.1} parent=0 // pred_region
    _
  $region29: #{tpu_custom_call.1} parent=0 // pred_fallthru
    _
  // Predicated region
  $region30: #{tpu_custom_call.1} parent=0 // pred_check
    _
  $region31: #{tpu_custom_call.1} parent=0 // pred_check_branch
    %789 = sbr.rel (0) target = $region33
  $region32: #{tpu_custom_call.1} parent=0 // pred_region
    _
  $region33: #{tpu_custom_call.1} parent=0 // pred_fallthru
    _

</llo_original>
